<compile_context>
chip_gen: v5e
topology: v5e:2x2
jax: 0.10.0
libtpu: 0.0.40
codegen_flags: <defaults>
</compile_context>

<pallas_src>
import functools

import numpy as np
import jax
import jax.numpy as jnp
from jax.experimental import pallas as pl
from jax.experimental.pallas import tpu as pltpu

FADE_CONST = 20

_TM_MAX = 256                 # row-tile cap (multiple of 8)
_TILE_TARGET_BYTES = 4 << 20  # ~4 MiB/tile: ~86% of HBM roofline in tile sweeps
_VMEM_LIMIT_BYTES = 48 << 20  # room for double-buffered in+out streams on v5e/v6e/v7x


def _wavaug_kernel(gain_ref, fade_ref, wav_ref, out_ref, *, total_t):
    """clamp(wav * gain, -1, 1) * linear_fade(t) on one (TM, TN) tile.

    gain_ref: (1,) f32 in SMEM.
    fade_ref: (2,) i32 in SMEM -> (fade_in_len, fade_out_len).
    wav_ref / out_ref: (TM, TN) VMEM tiles; time is the lane (last) axis.
    """
    tn = out_ref.shape[-1]
    g = gain_ref[0]
    fi_len = fade_ref[0]
    fo_len = fade_ref[1]

    # Global time positions covered by this tile (lane axis).
    t0 = pl.program_id(1) * tn
    pos = t0 + jax.lax.broadcasted_iota(jnp.int32, (1, tn), 1)
    posf = pos.astype(jnp.float32)

    # torchaudio linear fade-in: linspace(0, 1, fi_len) over the first fi_len samples.
    fi_denom = jnp.maximum(fi_len - 1, 1).astype(jnp.float32)
    fade_in = jnp.where(pos >= fi_len, 1.0, posf / fi_denom)

    # torchaudio linear fade-out: 1 - linspace(0, 1, fo_len) over the last fo_len samples.
    fo_start = total_t - fo_len
    fo_denom = jnp.maximum(fo_len - 1, 1).astype(jnp.float32)
    fade_out = jnp.where(pos < fo_start, 1.0,
                         1.0 - (pos - fo_start).astype(jnp.float32) / fo_denom)

    mask = jnp.clip(fade_in * fade_out, 0.0, 1.0)     # (1, TN), broadcasts over rows

    x = wav_ref[...].astype(jnp.float32) * g          # Vol (amplitude gain)
    x = jnp.clip(x, -1.0, 1.0)                        # torchaudio Vol clamps to [-1, 1]
    out_ref[...] = (x * mask).astype(out_ref.dtype)   # Fade, explicit cast on store


@functools.partial(jax.jit, static_argnames=("tm", "tn"))
def _wav_aug_impl(wav, gain, fade, *, tm, tn):
    B, C, T = wav.shape
    rows = B * C

    # Clamp fade lengths so they never exceed the waveform length.
    fade_in_len = jnp.minimum(fade, T).astype(jnp.int32)
    fade_out_len = jnp.minimum(FADE_CONST - fade, T).astype(jnp.int32)

    gain_arr = jnp.reshape(gain, (1,)).astype(jnp.float32)
    fade_arr = jnp.stack([fade_in_len, fade_out_len]).astype(jnp.int32)
    wav2d = wav.reshape(rows, T)

    grid = (pl.cdiv(rows, tm), pl.cdiv(T, tn))
    out2d = pl.pallas_call(
        functools.partial(_wavaug_kernel, total_t=T),
        out_shape=jax.ShapeDtypeStruct((rows, T), wav.dtype),
        grid=grid,
        in_specs=[
            pl.BlockSpec(memory_space=pltpu.SMEM),        # gain scalar
            pl.BlockSpec(memory_space=pltpu.SMEM),        # fade lengths
            pl.BlockSpec((tm, tn), lambda i, j: (i, j)),  # waveform tile
        ],
        out_specs=pl.BlockSpec((tm, tn), lambda i, j: (i, j)),
        compiler_params=pltpu.CompilerParams(
            dimension_semantics=("parallel", "parallel"),
            vmem_limit_bytes=_VMEM_LIMIT_BYTES),
    )(gain_arr, fade_arr, wav2d)
    return out2d.reshape(B, C, T)


def _pick_tiles(rows, T, itemsize, tile_target_bytes):
    """Block dims: full array dim when small (always legal), else (8,128)-aligned
    tiles sized so one tile is ~tile_target_bytes (big tiles amortize the
    ~0.35us/step pipeline overhead on this memory-bound kernel)."""
    tm = rows if rows <= _TM_MAX else _TM_MAX
    lane_budget = max(tile_target_bytes // (tm * itemsize), 128)
    lane_budget = (lane_budget // 128) * 128
    tn = T if T <= lane_budget else lane_budget
    return tm, tn


def wav_aug(wav, gain, fade, *, tile_target_bytes=_TILE_TARGET_BYTES):
    """out = Fade(fade, 20 - fade)(Vol(gain)(wav)). gain/fade may be Python scalars."""
    B, C, T = wav.shape
    tm, tn = _pick_tiles(B * C, T, jnp.dtype(wav.dtype).itemsize, tile_target_bytes)
    gain = jnp.asarray(gain, jnp.float32)
    fade = jnp.asarray(fade, jnp.int32)
    return _wav_aug_impl(wav, gain, fade, tm=tm, tn=tn)


if __name__ == "__main__":
    key = jax.random.PRNGKey(0)
    k_wav, k_gain, k_fade = jax.random.split(key, 3)

    # Small waveform; with the reduced test tile budget below, T spans 2 time
    # tiles (one full 2048-wide + one partial 128-wide), exercising the tiled
    # grid and partial-block path.
    B, C, T = 2, 4, 2176
    wav = jax.random.uniform(k_wav, (B, C, T), jnp.float32, minval=-1.0, maxval=1.0)

    # Deterministic "random" augmentation parameters (mirror torch.rand / randint .item()).
    gain = float(jax.random.uniform(k_gain, ()))
    fade = int(jax.random.randint(k_fade, (), 0, FADE_CONST))

    # Small tile budget so the small test shape still exercises multi-tile
    # pipelining; production calls use the default ~4 MiB tiles.
    out = wav_aug(wav, gain, fade, tile_target_bytes=64 * 1024)
    jax.block_until_ready(out)

    # Pure-numpy reference (torchaudio Vol + linear Fade semantics).
    fi_len = min(fade, T)
    fo_len = min(FADE_CONST - fade, T)
    fi = np.ones((T,), np.float32)
    if fi_len > 0:
        fi[:fi_len] = np.linspace(0.0, 1.0, fi_len, dtype=np.float32)
    fo = np.ones((T,), np.float32)
    if fo_len > 0:
        fo[T - fo_len:] = 1.0 - np.linspace(0.0, 1.0, fo_len, dtype=np.float32)
    ref = np.clip(np.asarray(wav) * np.float32(gain), -1.0, 1.0) * (fi * fo)[None, None, :]

    assert np.allclose(np.asarray(out), ref, atol=1e-5), "mismatch vs reference"
    print("KERNEL_OK")
</pallas_src>

<mosaic_0001>
module attributes {stable_mosaic.version = 11 : i64} {
  func.func @_wavaug_kernel(%arg0: i32, %arg1: i32, %arg2: memref<1xf32, #tpu.memory_space<smem>>, %arg3: memref<2xi32, #tpu.memory_space<smem>>, %arg4: memref<8x2048xf32, #tpu.memory_space<vmem>>, %arg5: memref<8x2048xf32, #tpu.memory_space<vmem>>) attributes {dimension_semantics = [#tpu.dimension_semantics<parallel>, #tpu.dimension_semantics<parallel>], iteration_bounds = array<i64: 1, 2>, scalar_prefetch = 0 : i64, scratch_operands = 0 : i64, tpu.core_type = #tpu.core_type<tc>, window_params = [{transform_indices = @transform_0, window_bounds = array<i64: 1>}, {transform_indices = @transform_1, window_bounds = array<i64: 2>}, {transform_indices = @transform_2, window_bounds = array<i64: 8, 2048>}, {transform_indices = @transform_3, window_bounds = array<i64: 8, 2048>}]} {
    %c0 = arith.constant 0 : index
    %0 = memref.load %arg2[%c0] : memref<1xf32, #tpu.memory_space<smem>>
    %c0_0 = arith.constant 0 : index
    %1 = memref.load %arg3[%c0_0] : memref<2xi32, #tpu.memory_space<smem>>
    %c1 = arith.constant 1 : index
    %2 = memref.load %arg3[%c1] : memref<2xi32, #tpu.memory_space<smem>>
    %c2048_i32 = arith.constant 2048 : i32
    %3 = arith.muli %arg1, %c2048_i32 : i32
    %4 = tpu.iota {dimensions = array<i32: 1>} : vector<1x2048xi32>
    %5 = vector.broadcast %3 : i32 to vector<1x2048xi32>
    %6 = arith.addi %5, %4 : vector<1x2048xi32>
    %7 = arith.sitofp %6 : vector<1x2048xi32> to vector<1x2048xf32>
    %c1_i32 = arith.constant 1 : i32
    %8 = arith.subi %1, %c1_i32 : i32
    %c1_i32_1 = arith.constant 1 : i32
    %9 = arith.maxsi %8, %c1_i32_1 : i32
    %10 = arith.sitofp %9 : i32 to f32
    %11 = vector.broadcast %1 : i32 to vector<1x2048xi32>
    %12 = arith.cmpi sge, %6, %11 : vector<1x2048xi32>
    %13 = vector.broadcast %10 : f32 to vector<1x2048xf32>
    %14 = arith.divf %7, %13 : vector<1x2048xf32>
    %cst = arith.constant 1.000000e+00 : f32
    %15 = vector.broadcast %cst : f32 to vector<1x2048xf32>
    %16 = arith.select %12, %15, %14 : vector<1x2048xi1>, vector<1x2048xf32>
    %c2176_i32 = arith.constant 2176 : i32
    %17 = arith.subi %c2176_i32, %2 : i32
    %c1_i32_2 = arith.constant 1 : i32
    %18 = arith.subi %2, %c1_i32_2 : i32
    %c1_i32_3 = arith.constant 1 : i32
    %19 = arith.maxsi %18, %c1_i32_3 : i32
    %20 = arith.sitofp %19 : i32 to f32
    %21 = vector.broadcast %17 : i32 to vector<1x2048xi32>
    %22 = arith.cmpi slt, %6, %21 : vector<1x2048xi32>
    %23 = vector.broadcast %17 : i32 to vector<1x2048xi32>
    %24 = arith.subi %6, %23 : vector<1x2048xi32>
    %25 = arith.sitofp %24 : vector<1x2048xi32> to vector<1x2048xf32>
    %26 = vector.broadcast %20 : f32 to vector<1x2048xf32>
    %27 = arith.divf %25, %26 : vector<1x2048xf32>
    %cst_4 = arith.constant 1.000000e+00 : f32
    %28 = vector.broadcast %cst_4 : f32 to vector<1x2048xf32>
    %29 = arith.subf %28, %27 : vector<1x2048xf32>
    %cst_5 = arith.constant 1.000000e+00 : f32
    %30 = vector.broadcast %cst_5 : f32 to vector<1x2048xf32>
    %31 = arith.select %22, %30, %29 : vector<1x2048xi1>, vector<1x2048xf32>
    %32 = arith.mulf %16, %31 : vector<1x2048xf32>
    %cst_6 = arith.constant 0.000000e+00 : f32
    %cst_7 = arith.constant 1.000000e+00 : f32
    %33 = vector.broadcast %cst_6 : f32 to vector<1x2048xf32>
    %34 = arith.maximumf %33, %32 : vector<1x2048xf32>
    %35 = vector.broadcast %cst_7 : f32 to vector<1x2048xf32>
    %36 = arith.minimumf %35, %34 : vector<1x2048xf32>
    %c0_8 = arith.constant 0 : index
    %c0_9 = arith.constant 0 : index
    %37 = vector.load %arg4[%c0_8, %c0_9] : memref<8x2048xf32, #tpu.memory_space<vmem>>, vector<8x2048xf32>
    %38 = vector.broadcast %0 : f32 to vector<8x2048xf32>
    %39 = arith.mulf %37, %38 : vector<8x2048xf32>
    %cst_10 = arith.constant -1.000000e+00 : f32
    %cst_11 = arith.constant 1.000000e+00 : f32
    %40 = vector.broadcast %cst_10 : f32 to vector<8x2048xf32>
    %41 = arith.maximumf %40, %39 : vector<8x2048xf32>
    %42 = vector.broadcast %cst_11 : f32 to vector<8x2048xf32>
    %43 = arith.minimumf %42, %41 : vector<8x2048xf32>
    %44 = vector.broadcast %36 : vector<1x2048xf32> to vector<8x2048xf32>
    %45 = arith.mulf %43, %44 : vector<8x2048xf32>
    %c0_12 = arith.constant 0 : index
    %c0_13 = arith.constant 0 : index
    %46 = vector.load %arg5[%c0_12, %c0_13] : memref<8x2048xf32, #tpu.memory_space<vmem>>, vector<8x2048xf32>
    tpu.vector_store %arg5[%c0_12, %c0_13], %45 {strides = array<i32>} : memref<8x2048xf32, #tpu.memory_space<vmem>>, vector<8x2048xf32>,
    return
  }
  func.func @transform_0(%arg0: i32, %arg1: i32) -> i32 {
    %c0_i32 = arith.constant 0 : i32
    %c0_i32_0 = arith.constant 0 : i32
    return %c0_i32 : i32
  }
  func.func @transform_1(%arg0: i32, %arg1: i32) -> i32 {
    %c0_i32 = arith.constant 0 : i32
    %c0_i32_0 = arith.constant 0 : i32
    return %c0_i32 : i32
  }
  func.func @transform_2(%arg0: i32, %arg1: i32) -> (i32, i32) {
    %c0_i32 = arith.constant 0 : i32
    return %arg0, %arg1 : i32, i32
  }
  func.func @transform_3(%arg0: i32, %arg1: i32) -> (i32, i32) {
    %c0_i32 = arith.constant 0 : i32
    return %arg0, %arg1 : i32, i32
  }
}

</mosaic_0001>

<llo_original>
// kernel: _wav_aug_impl.1
$region0: #{_wav_aug_impl.1}
  #allocation0 [shape = 'u32[]', space=smem, size = 0x4, offset = 0x4, fixed_abs, tag = 'smem constant byte address 0x4 - core index']
  #allocation1 [shape = 'u32[72,128]{1,0:T(1,128)}', space=vmem, size = 0x9000, scoped, tag = 'internal scratch']
  #allocation2 [shape = 'f32[1]{0:T(128)S(6)}', space=smem, size = 0x200, scoped, tag = 'scoped memory for _wav_aug_impl.1']
  %s0 = inlined_call_operand.<no memory space> [shape: f32[1], index: 0, kind: input, shape index: {}]
  %s1 = inlined_call_operand.vmem [shape: s32[2], index: 1, kind: input, shape index: {}]
  %s2 = inlined_call_operand.vmem [shape: f32[8,2176], index: 2, kind: input, shape index: {}]
  %s3 = inlined_call_operand.vmem [shape: f32[8,2176], index: 3, kind: output, shape index: {}]
  %s4 = sld [smem:[#allocation0]]
  $region111: #{_wav_aug_impl.1} parent=0
    _
  %s6 = ssub.s32 1, %s4
  %s7 = scalar_select 0, %s6, %s4
  %8 = sst [smem:[#allocation2]] %s0
  $region1: #{_wav_aug_impl.1} parent=0
    #allocation3 [shape = 'u8[512]{0}', space=smem, size = 0x200, scoped, tag = 'input window, operand 1, single buffered']
    #allocation4 [shape = 's32[2]{0}', space=sflag, size = 0x8, scoped, tag = 'scoped memory for _wav_aug_impl.1']
    #allocation5 [shape = 'u8[131072]{0}', space=vmem, size = 0x20000, scoped, tag = 'output window, operand 0']
    %9 = vsyncpa [#allocation4], 0
    loop: start=0, step=1, limit=4
    $region2: #{_wav_aug_impl.1} parent=1 // loop_pre_header
      _
    $region3: #{_wav_aug_impl.1} parent=1 // loop_header
      %s11 = sphi 0, %s15
      %p12 = scmp.ge.s32.totalorder %s11, 4
      %s18 = sphi 0, %s30
      %s19 = sphi 0, %s26
      %s20 = sphi 0, %s18
      %s21 = sphi 0, %s19
      %s22 = sphi 0, %s20
      %s23 = sphi 0, %s21
      %s31 = sphi 0, %s31
      %s33 = sphi 0, %s31
      %s34 = sphi 0, %s33
      %s48 = sphi 0, %s34
      %s52 = sphi 0, %s52
      %s54 = sphi 0, %s52
      %s55 = sphi 0, %s54
      %s69 = sphi 0, %s55
      %s77 = sphi 0, %s79
      %s80 = sphi 0, %s77
      %s81 = sphi 0, %s80
      %s97 = sphi 0, %s81
      %s105 = sphi 0, %s107
      %s108 = sphi 0, %s105
      %s109 = sphi 0, %s108
      %s125 = sphi 0, %s109
    $region4: #{_wav_aug_impl.1} parent=1 // loop_header_branch
      %14 = sbr.rel (%p12) target = $region8
    $region5: #{_wav_aug_impl.1} parent=1 // loop_body
      %s16 = ssub.s32 %s11, 1
      %s17 = ssub.s32 %s11, 2
      %s24 = sadd.s32 1, %s19
      %p25 = scmp.ge.s32.totalorder %s24, 2
      %s26 = scalar_select %p25, 0, %s24
      %s27 = sadd.s32 1, %s18
      %s28 = scalar_select %p25, %s27, %s18
      %p29 = scmp.ge.s32.totalorder %s28, 1
      %s30 = scalar_select %p29, 0, %s28
      %s32 = sadd.s32 %s31, 1
      %p35 = scmp.eq.s32.totalorder %s11, 1
      %p36 = scmp.ne.s32.totalorder %s31, %s33
      %p37 = scmp.eq.s32.totalorder %s11, 0
      %p38 = por %p36, %p37
      %p39 = scmp.ne.s32.totalorder %s31, %s33
      %p40 = scmp.eq.s32.totalorder %s16, 1
      %p41 = por %p39, %p40
      %p42 = scmp.ne.s32.totalorder %s33, %s34
      %p43 = scmp.eq.s32.totalorder %s16, 0
      %p44 = por %p42, %p43
      %p45 = scmp.ne.s32.totalorder %s33, %s34
      %p46 = scmp.eq.s32.totalorder %s17, 1
      %p47 = por %p45, %p46
      %p49 = scmp.ne.s32.totalorder %s34, %s48
      %p50 = scmp.eq.s32.totalorder %s17, 0
      %p51 = por %p49, %p50
      %s53 = sadd.s32 %s52, 1
      %p56 = scmp.eq.s32.totalorder %s11, 1
      %p57 = scmp.ne.s32.totalorder %s52, %s54
      %p58 = scmp.eq.s32.totalorder %s11, 0
      %p59 = por %p57, %p58
      %p60 = scmp.ne.s32.totalorder %s52, %s54
      %p61 = scmp.eq.s32.totalorder %s16, 1
      %p62 = por %p60, %p61
      %p63 = scmp.ne.s32.totalorder %s54, %s55
      %p64 = scmp.eq.s32.totalorder %s16, 0
      %p65 = por %p63, %p64
      %p66 = scmp.ne.s32.totalorder %s54, %s55
      %p67 = scmp.eq.s32.totalorder %s17, 1
      %p68 = por %p66, %p67
      %p70 = scmp.ne.s32.totalorder %s55, %s69
      %p71 = scmp.eq.s32.totalorder %s17, 0
      %p72 = por %p70, %p71
      %s73 = ssub.s32 %s18, %s30
      %s74 = ssub.s32 %s19, %s26
      %s75 = sor.u32 %s73, %s74
      %p76 = scmp.eq.s32.totalorder %s75, 0
      %s78 = sadd.s32 %s77, 1
      %s79 = scalar_select %p76, %s77, %s78
      %p82 = pneg %p76
      %p83 = scmp.eq.s32.totalorder %s11, 1
      %p84 = por %p82, %p83
      %p85 = scmp.ne.s32.totalorder %s77, %s80
      %p86 = scmp.eq.s32.totalorder %s11, 0
      %p87 = por %p85, %p86
      %p88 = scmp.ne.s32.totalorder %s77, %s80
      %p89 = scmp.eq.s32.totalorder %s16, 1
      %p90 = por %p88, %p89
      %p91 = scmp.ne.s32.totalorder %s80, %s81
      %p92 = scmp.eq.s32.totalorder %s16, 0
      %p93 = por %p91, %p92
      %p94 = scmp.ne.s32.totalorder %s80, %s81
      %p95 = scmp.eq.s32.totalorder %s17, 1
      %p96 = por %p94, %p95
      %p98 = scmp.ne.s32.totalorder %s81, %s97
      %p99 = scmp.eq.s32.totalorder %s17, 0
      %p100 = por %p98, %p99
      %s101 = ssub.s32 %s18, %s30
      %s102 = ssub.s32 %s19, %s26
      %s103 = sor.u32 %s101, %s102
      %p104 = scmp.eq.s32.totalorder %s103, 0
      %s106 = sadd.s32 %s105, 1
      %s107 = scalar_select %p104, %s105, %s106
      %p110 = pneg %p104
      %p111 = scmp.eq.s32.totalorder %s11, 1
      %p112 = por %p110, %p111
      %p113 = scmp.ne.s32.totalorder %s105, %s108
      %p114 = scmp.eq.s32.totalorder %s11, 0
      %p115 = por %p113, %p114
      %p116 = scmp.ne.s32.totalorder %s105, %s108
      %p117 = scmp.eq.s32.totalorder %s16, 1
      %p118 = por %p116, %p117
      %p119 = scmp.ne.s32.totalorder %s108, %s109
      %p120 = scmp.eq.s32.totalorder %s16, 0
      %p121 = por %p119, %p120
      %p122 = scmp.ne.s32.totalorder %s108, %s109
      %p123 = scmp.eq.s32.totalorder %s17, 1
      %p124 = por %p122, %p123
      %p126 = scmp.ne.s32.totalorder %s109, %s125
      %p127 = scmp.eq.s32.totalorder %s17, 0
      %p128 = por %p126, %p127
      %p129 = scmp.le.s32.totalorder 1, %s11
      %p130 = scmp.lt.s32.totalorder %s11, 3
      %p131 = pnand %p129, %p130
      %p132 = pneg %p131
      // Predicated region
      $region9: #{_wav_aug_impl.1} parent=5 // pred_check
        _
      $region10: #{_wav_aug_impl.1} parent=5 // pred_check_branch
        %134 = sbr.rel (%p131) target = $region12
      $region11: #{_wav_aug_impl.1} parent=5 // pred_region
        %s135 = ssub.s32 %s11, 1
        // Predicated region
        $region13: #{_wav_aug_impl.1} parent=11 // pred_check
          %p136 = pneg %p44
        $region14: #{_wav_aug_impl.1} parent=11 // pred_check_branch
          %138 = sbr.rel (%p136) target = $region16
        $region15: #{_wav_aug_impl.1} parent=11 // pred_region
          _
        $region16: #{_wav_aug_impl.1} parent=11 // pred_fallthru
          _
        // Predicated region
        $region17: #{_wav_aug_impl.1} parent=11 // pred_check
          %p139 = pneg %p65
        $region18: #{_wav_aug_impl.1} parent=11 // pred_check_branch
          %141 = sbr.rel (%p139) target = $region20
        $region19: #{_wav_aug_impl.1} parent=11 // pred_region
          %143 = vsyncadd [#allocation4], 0
          %s145 = sshll.u32 %s1, 4
          %s146 = int_to_ptr.vmem [resolvable:$true] %s145
          %148 = dma.vmem_to_smem %s146, 16, [#allocation3], [#allocation4]
        $region20: #{_wav_aug_impl.1} parent=11 // pred_fallthru
          _
      $region12: #{_wav_aug_impl.1} parent=5 // pred_fallthru
        _
      %p149 = scmp.lt.s32.totalorder %s11, 2
      // Predicated region
      $region21: #{_wav_aug_impl.1} parent=5 // pred_check
        %p150 = pneg %p149
      $region22: #{_wav_aug_impl.1} parent=5 // pred_check_branch
        %152 = sbr.rel (%p150) target = $region24
      $region23: #{_wav_aug_impl.1} parent=5 // pred_region
        // Predicated region
        $region25: #{_wav_aug_impl.1} parent=23 // pred_check
          %p153 = pneg %p87
        $region26: #{_wav_aug_impl.1} parent=23 // pred_check_branch
          %155 = sbr.rel (%p153) target = $region28
        $region27: #{_wav_aug_impl.1} parent=23 // pred_region
          %s156 = smul.u32 16, %s19
          %s157 = ssub.s32 17, %s156
          %p158 = scmp.lt.s32.totalorder %s157, 16
          %s159 = scalar_select %p158, %s157, 16
          %s160 = smul.u32 8, %s159
          %p161 = scmp.lt.s32.totalorder %s18, 0
          %s162 = scalar_select %p161, %s18, 0
          %p163 = scmp.lt.s32.totalorder %s156, 16
          %s164 = scalar_select %p163, %s156, 16
          %s165 = smul.addr %s162, 17
          %s166 = sadd.s32 %s164, %s165
          %s167 = smul.addr %s166, 8
          %s168 = scalar_lea.vmem %s2, %s167
          %s169 = smul.u32 16, %s19
          %s170 = ssub.s32 17, %s169
          %p171 = scmp.lt.s32.totalorder %s170, 16
          %s172 = scalar_select %p171, %s170, 16
          %s173 = smul.u32 8, %s172
        $region28: #{_wav_aug_impl.1} parent=23 // pred_fallthru
          _
      $region24: #{_wav_aug_impl.1} parent=5 // pred_fallthru
        _
      %p174 = scmp.le.s32.totalorder 1, %s11
      %p175 = scmp.lt.s32.totalorder %s11, 3
      %p176 = pnand %p174, %p175
      %p177 = pneg %p176
      // Predicated region
      $region29: #{_wav_aug_impl.1} parent=5 // pred_check
        _
      $region30: #{_wav_aug_impl.1} parent=5 // pred_check_branch
        %179 = sbr.rel (%p176) target = $region32
      $region31: #{_wav_aug_impl.1} parent=5 // pred_region
        %s180 = ssub.s32 %s11, 1
        // Predicated region
        $region33: #{_wav_aug_impl.1} parent=31 // pred_check
          %p181 = pneg %p65
        $region34: #{_wav_aug_impl.1} parent=31 // pred_check_branch
          %183 = sbr.rel (%p181) target = $region36
        $region35: #{_wav_aug_impl.1} parent=31 // pred_region
          %185 = dma.done [#allocation4], 16
        $region36: #{_wav_aug_impl.1} parent=31 // pred_fallthru
          _
        %186 = sfence
        %p187 = pneg %p44
        %p188 = pneg %p41
        %p189 = pneg %p65
        %p190 = pneg %p62
        %s191 = smul.u32 16, %s21
        %s192 = ssub.s32 17, %s191
        %p193 = scmp.lt.s32.totalorder %s192, 16
        %s194 = scalar_select %p193, %s192, 16
        %s195 = smul.u32 8, %s194
        %p196 = scmp.lt.s32.totalorder %s20, 0
        %s197 = scalar_select %p196, %s20, 0
        %p198 = scmp.lt.s32.totalorder %s191, 16
        %s199 = scalar_select %p198, %s191, 16
        %s200 = smul.addr %s197, 17
        %s201 = sadd.s32 %s199, %s200
        %s202 = smul.addr %s201, 8
        %s203 = scalar_lea.vmem %s2, %s202
        %p204 = pneg %p93
        %p205 = pneg %p90
        %p206 = pneg %p121
        %p207 = pneg %p118
        %s208 = sand.u32 %s108, 1
        %s209 = sand.u32 %s108, 1
        %s210 = smul.addr %s209, 128
        %s211 = scalar_lea.vmem [#allocation5], %s210
        %s212 = smul.u32 16, %s21
        %s213 = ssub.s32 17, %s212
        %p214 = scmp.lt.s32.totalorder %s213, 16
        %s215 = scalar_select %p214, %s213, 16
        %s216 = smul.u32 8, %s215
        %p217 = scmp.lt.s32.totalorder %s20, 0
        %s218 = scalar_select %p217, %s20, 0
        %p219 = scmp.lt.s32.totalorder %s212, 16
        %s220 = scalar_select %p219, %s212, 16
        %s221 = smul.addr %s218, 17
        %s222 = sadd.s32 %s220, %s221
        %s223 = smul.addr %s222, 8
        %s224 = scalar_lea.vmem %s2, %s223
        %s225 = smul.u32 16, %s21
        %s226 = ssub.s32 17, %s225
        %p227 = scmp.lt.s32.totalorder %s226, 16
        %s228 = scalar_select %p227, %s226, 16
        %s229 = smul.u32 8, %s228
        %s230 = smul.u32 16, %s21
        %s231 = ssub.s32 17, %s230
        %p232 = scmp.lt.s32.totalorder %s231, 16
        %s233 = scalar_select %p232, %s231, 16
        %s234 = smul.u32 8, %s233
        %s235 = sld [smem:[#allocation2]]
        %s236 = sld [smem:[#allocation3]]
        %s237 = sld [smem:[#allocation3 + $0x1]]
        %s238 = smul.u32 %s21, 2048
        %v239 = vlaneseq
        %v240 = vand.u32 %v239, 127
        %v241 = vadd.s32 %v240, 128
        %v242 = vadd.s32 %v240, 256
        %v243 = vadd.s32 %v240, 384
        %v244 = vadd.s32 %v240, 512
        %v245 = vadd.s32 %v240, 640
        %v246 = vadd.s32 %v240, 768
        %v247 = vadd.s32 %v240, 896
        %v248 = vadd.s32 %v240, 1024
        %v249 = vadd.s32 %v240, 1152
        %v250 = vadd.s32 %v240, 1280
        %v251 = vadd.s32 %v240, 1408
        %v252 = vadd.s32 %v240, 1536
        %v253 = vadd.s32 %v240, 1664
        %v254 = vadd.s32 %v240, 1792
        %v255 = vadd.s32 %v240, 1920
        %v256 = vstv %s238
        %v257 = vadd.s32 %v256, %v240
        %v258 = vadd.s32 %v256, %v241
        %v259 = vadd.s32 %v256, %v242
        %v260 = vadd.s32 %v256, %v243
        %v261 = vadd.s32 %v256, %v244
        %v262 = vadd.s32 %v256, %v245
        %v263 = vadd.s32 %v256, %v246
        %v264 = vadd.s32 %v256, %v247
        %v265 = vadd.s32 %v256, %v248
        %v266 = vadd.s32 %v256, %v249
        %v267 = vadd.s32 %v256, %v250
        %v268 = vadd.s32 %v256, %v251
        %v269 = vadd.s32 %v256, %v252
        %v270 = vadd.s32 %v256, %v253
        %v271 = vadd.s32 %v256, %v254
        %v272 = vadd.s32 %v256, %v255
        %v273 = vcvt.s32.f32 %v257
        %v274 = vcvt.s32.f32 %v258
        %v275 = vcvt.s32.f32 %v259
        %v276 = vcvt.s32.f32 %v260
        %v277 = vcvt.s32.f32 %v261
        %v278 = vcvt.s32.f32 %v262
        %v279 = vcvt.s32.f32 %v263
        %v280 = vcvt.s32.f32 %v264
        %v281 = vcvt.s32.f32 %v265
        %v282 = vcvt.s32.f32 %v266
        %v283 = vcvt.s32.f32 %v267
        %v284 = vcvt.s32.f32 %v268
        %v285 = vcvt.s32.f32 %v269
        %v286 = vcvt.s32.f32 %v270
        %v287 = vcvt.s32.f32 %v271
        %v288 = vcvt.s32.f32 %v272
        %s289 = ssub.s32 %s236, 1
        %p290 = scmp.gt.s32.totalorder %s289, 1
        %s291 = scalar_select %p290, %s289, 1
        %s292 = scvt.s32.f32 %s291
        %v293 = vstv %s236
        %vm294 = vcmp.ge.s32.totalorder %v257, %v293
        %vm295 = vcmp.ge.s32.totalorder %v258, %v293
        %vm296 = vcmp.ge.s32.totalorder %v259, %v293
        %vm297 = vcmp.ge.s32.totalorder %v260, %v293
        %vm298 = vcmp.ge.s32.totalorder %v261, %v293
        %vm299 = vcmp.ge.s32.totalorder %v262, %v293
        %vm300 = vcmp.ge.s32.totalorder %v263, %v293
        %vm301 = vcmp.ge.s32.totalorder %v264, %v293
        %vm302 = vcmp.ge.s32.totalorder %v265, %v293
        %vm303 = vcmp.ge.s32.totalorder %v266, %v293
        %vm304 = vcmp.ge.s32.totalorder %v267, %v293
        %vm305 = vcmp.ge.s32.totalorder %v268, %v293
        %vm306 = vcmp.ge.s32.totalorder %v269, %v293
        %vm307 = vcmp.ge.s32.totalorder %v270, %v293
        %vm308 = vcmp.ge.s32.totalorder %v271, %v293
        %vm309 = vcmp.ge.s32.totalorder %v272, %v293
        %v310 = vstv %s292
        %v311 = vrcp.pop %v310
        %v312 = vmul.f32 %v310, %v311
        %v313 = vsub.f32 1.0, %v312
        %v314 = vmul.f32 %v311, %v313
        %v315 = vadd.f32 %v311, %v314
        %vm316 = vweird.f32 %v310
        %vm317 = vweird.f32 %v311
        %vm318 = vmor %vm316, %vm317
        %v319 = vsel %vm318, %v311, %v315
        %v320 = vand.u32 2147483647, %v310
        %vm321 = vcmp.eq.f32.partialorder %v320, 8.507059e+37
        %v322 = vand.u32 %v310, 2147483648
        %v323 = vor.u32 1.1754944e-38, %v322
        %v324 = vsel %vm321, %v323, %v319
        %v325 = vmul.f32 %v273, %v324
        %v326 = vmul.f32 %v274, %v324
        %v327 = vmul.f32 %v275, %v324
        %v328 = vmul.f32 %v276, %v324
        %v329 = vmul.f32 %v277, %v324
        %v330 = vmul.f32 %v278, %v324
        %v331 = vmul.f32 %v279, %v324
        %v332 = vmul.f32 %v280, %v324
        %v333 = vmul.f32 %v281, %v324
        %v334 = vmul.f32 %v282, %v324
        %v335 = vmul.f32 %v283, %v324
        %v336 = vmul.f32 %v284, %v324
        %v337 = vmul.f32 %v285, %v324
        %v338 = vmul.f32 %v286, %v324
        %v339 = vmul.f32 %v287, %v324
        %v340 = vmul.f32 %v288, %v324
        %v341 = vsel %vm294, 1.0, %v325
        %v342 = vsel %vm295, 1.0, %v326
        %v343 = vsel %vm296, 1.0, %v327
        %v344 = vsel %vm297, 1.0, %v328
        %v345 = vsel %vm298, 1.0, %v329
        %v346 = vsel %vm299, 1.0, %v330
        %v347 = vsel %vm300, 1.0, %v331
        %v348 = vsel %vm301, 1.0, %v332
        %v349 = vsel %vm302, 1.0, %v333
        %v350 = vsel %vm303, 1.0, %v334
        %v351 = vsel %vm304, 1.0, %v335
        %v352 = vsel %vm305, 1.0, %v336
        %v353 = vsel %vm306, 1.0, %v337
        %v354 = vsel %vm307, 1.0, %v338
        %v355 = vsel %vm308, 1.0, %v339
        %v356 = vsel %vm309, 1.0, %v340
        %s357 = ssub.s32 2176, %s237
        %s358 = ssub.s32 %s237, 1
        %p359 = scmp.gt.s32.totalorder %s358, 1
        %s360 = scalar_select %p359, %s358, 1
        %s361 = scvt.s32.f32 %s360
        %v362 = vstv %s357
        %vm363 = vcmp.lt.s32.totalorder %v257, %v362
        %vm364 = vcmp.lt.s32.totalorder %v258, %v362
        %vm365 = vcmp.lt.s32.totalorder %v259, %v362
        %vm366 = vcmp.lt.s32.totalorder %v260, %v362
        %vm367 = vcmp.lt.s32.totalorder %v261, %v362
        %vm368 = vcmp.lt.s32.totalorder %v262, %v362
        %vm369 = vcmp.lt.s32.totalorder %v263, %v362
        %vm370 = vcmp.lt.s32.totalorder %v264, %v362
        %vm371 = vcmp.lt.s32.totalorder %v265, %v362
        %vm372 = vcmp.lt.s32.totalorder %v266, %v362
        %vm373 = vcmp.lt.s32.totalorder %v267, %v362
        %vm374 = vcmp.lt.s32.totalorder %v268, %v362
        %vm375 = vcmp.lt.s32.totalorder %v269, %v362
        %vm376 = vcmp.lt.s32.totalorder %v270, %v362
        %vm377 = vcmp.lt.s32.totalorder %v271, %v362
        %vm378 = vcmp.lt.s32.totalorder %v272, %v362
        %v379 = vsub.s32 %v257, %v362
        %v380 = vsub.s32 %v258, %v362
        %v381 = vsub.s32 %v259, %v362
        %v382 = vsub.s32 %v260, %v362
        %v383 = vsub.s32 %v261, %v362
        %v384 = vsub.s32 %v262, %v362
        %v385 = vsub.s32 %v263, %v362
        %v386 = vsub.s32 %v264, %v362
        %v387 = vsub.s32 %v265, %v362
        %v388 = vsub.s32 %v266, %v362
        %v389 = vsub.s32 %v267, %v362
        %v390 = vsub.s32 %v268, %v362
        %v391 = vsub.s32 %v269, %v362
        %v392 = vsub.s32 %v270, %v362
        %v393 = vsub.s32 %v271, %v362
        %v394 = vsub.s32 %v272, %v362
        %v395 = vcvt.s32.f32 %v379
        %v396 = vcvt.s32.f32 %v380
        %v397 = vcvt.s32.f32 %v381
        %v398 = vcvt.s32.f32 %v382
        %v399 = vcvt.s32.f32 %v383
        %v400 = vcvt.s32.f32 %v384
        %v401 = vcvt.s32.f32 %v385
        %v402 = vcvt.s32.f32 %v386
        %v403 = vcvt.s32.f32 %v387
        %v404 = vcvt.s32.f32 %v388
        %v405 = vcvt.s32.f32 %v389
        %v406 = vcvt.s32.f32 %v390
        %v407 = vcvt.s32.f32 %v391
        %v408 = vcvt.s32.f32 %v392
        %v409 = vcvt.s32.f32 %v393
        %v410 = vcvt.s32.f32 %v394
        %v411 = vstv %s361
        %v412 = vrcp.pop %v411
        %v413 = vmul.f32 %v411, %v412
        %v414 = vsub.f32 1.0, %v413
        %v415 = vmul.f32 %v412, %v414
        %v416 = vadd.f32 %v412, %v415
        %vm417 = vweird.f32 %v411
        %vm418 = vweird.f32 %v412
        %vm419 = vmor %vm417, %vm418
        %v420 = vsel %vm419, %v412, %v416
        %v421 = vand.u32 2147483647, %v411
        %vm422 = vcmp.eq.f32.partialorder %v421, 8.507059e+37
        %v423 = vand.u32 %v411, 2147483648
        %v424 = vor.u32 1.1754944e-38, %v423
        %v425 = vsel %vm422, %v424, %v420
        %v426 = vmul.f32 %v395, %v425
        %v427 = vmul.f32 %v396, %v425
        %v428 = vmul.f32 %v397, %v425
        %v429 = vmul.f32 %v398, %v425
        %v430 = vmul.f32 %v399, %v425
        %v431 = vmul.f32 %v400, %v425
        %v432 = vmul.f32 %v401, %v425
        %v433 = vmul.f32 %v402, %v425
        %v434 = vmul.f32 %v403, %v425
        %v435 = vmul.f32 %v404, %v425
        %v436 = vmul.f32 %v405, %v425
        %v437 = vmul.f32 %v406, %v425
        %v438 = vmul.f32 %v407, %v425
        %v439 = vmul.f32 %v408, %v425
        %v440 = vmul.f32 %v409, %v425
        %v441 = vmul.f32 %v410, %v425
        %v442 = vsub.f32 1.0, %v426
        %v443 = vsub.f32 1.0, %v427
        %v444 = vsub.f32 1.0, %v428
        %v445 = vsub.f32 1.0, %v429
        %v446 = vsub.f32 1.0, %v430
        %v447 = vsub.f32 1.0, %v431
        %v448 = vsub.f32 1.0, %v432
        %v449 = vsub.f32 1.0, %v433
        %v450 = vsub.f32 1.0, %v434
        %v451 = vsub.f32 1.0, %v435
        %v452 = vsub.f32 1.0, %v436
        %v453 = vsub.f32 1.0, %v437
        %v454 = vsub.f32 1.0, %v438
        %v455 = vsub.f32 1.0, %v439
        %v456 = vsub.f32 1.0, %v440
        %v457 = vsub.f32 1.0, %v441
        %v458 = vsel %vm363, 1.0, %v442
        %v459 = vsel %vm364, 1.0, %v443
        %v460 = vsel %vm365, 1.0, %v444
        %v461 = vsel %vm366, 1.0, %v445
        %v462 = vsel %vm367, 1.0, %v446
        %v463 = vsel %vm368, 1.0, %v447
        %v464 = vsel %vm369, 1.0, %v448
        %v465 = vsel %vm370, 1.0, %v449
        %v466 = vsel %vm371, 1.0, %v450
        %v467 = vsel %vm372, 1.0, %v451
        %v468 = vsel %vm373, 1.0, %v452
        %v469 = vsel %vm374, 1.0, %v453
        %v470 = vsel %vm375, 1.0, %v454
        %v471 = vsel %vm376, 1.0, %v455
        %v472 = vsel %vm377, 1.0, %v456
        %v473 = vsel %vm378, 1.0, %v457
        %v474 = vmul.f32 %v341, %v458
        %v475 = vmul.f32 %v342, %v459
        %v476 = vmul.f32 %v343, %v460
        %v477 = vmul.f32 %v344, %v461
        %v478 = vmul.f32 %v345, %v462
        %v479 = vmul.f32 %v346, %v463
        %v480 = vmul.f32 %v347, %v464
        %v481 = vmul.f32 %v348, %v465
        %v482 = vmul.f32 %v349, %v466
        %v483 = vmul.f32 %v350, %v467
        %v484 = vmul.f32 %v351, %v468
        %v485 = vmul.f32 %v352, %v469
        %v486 = vmul.f32 %v353, %v470
        %v487 = vmul.f32 %v354, %v471
        %v488 = vmul.f32 %v355, %v472
        %v489 = vmul.f32 %v356, %v473
        %v490 = vmax.f32 %v474, 0.0
        %v491 = vmax.f32 %v475, 0.0
        %v492 = vmax.f32 %v476, 0.0
        %v493 = vmax.f32 %v477, 0.0
        %v494 = vmax.f32 %v478, 0.0
        %v495 = vmax.f32 %v479, 0.0
        %v496 = vmax.f32 %v480, 0.0
        %v497 = vmax.f32 %v481, 0.0
        %v498 = vmax.f32 %v482, 0.0
        %v499 = vmax.f32 %v483, 0.0
        %v500 = vmax.f32 %v484, 0.0
        %v501 = vmax.f32 %v485, 0.0
        %v502 = vmax.f32 %v486, 0.0
        %v503 = vmax.f32 %v487, 0.0
        %v504 = vmax.f32 %v488, 0.0
        %v505 = vmax.f32 %v489, 0.0
        %v506 = vmin.f32 %v490, 1.0
        %v507 = vmin.f32 %v491, 1.0
        %v508 = vmin.f32 %v492, 1.0
        %v509 = vmin.f32 %v493, 1.0
        %v510 = vmin.f32 %v494, 1.0
        %v511 = vmin.f32 %v495, 1.0
        %v512 = vmin.f32 %v496, 1.0
        %v513 = vmin.f32 %v497, 1.0
        %v514 = vmin.f32 %v498, 1.0
        %v515 = vmin.f32 %v499, 1.0
        %v516 = vmin.f32 %v500, 1.0
        %v517 = vmin.f32 %v501, 1.0
        %v518 = vmin.f32 %v502, 1.0
        %v519 = vmin.f32 %v503, 1.0
        %v520 = vmin.f32 %v504, 1.0
        %v521 = vmin.f32 %v505, 1.0
        %v522 = vld [vmem:[%s224] sm:$0xff]
        %v523 = vld [vmem:[%s224 + $0x8] sm:$0xff]
        %v524 = vld [vmem:[%s224 + $0x10] sm:$0xff]
        %v525 = vld [vmem:[%s224 + $0x18] sm:$0xff]
        %v526 = vld [vmem:[%s224 + $0x20] sm:$0xff]
        %v527 = vld [vmem:[%s224 + $0x28] sm:$0xff]
        %v528 = vld [vmem:[%s224 + $0x30] sm:$0xff]
        %v529 = vld [vmem:[%s224 + $0x38] sm:$0xff]
        %v530 = vld [vmem:[%s224 + $0x40] sm:$0xff]
        %v531 = vld [vmem:[%s224 + $0x48] sm:$0xff]
        %v532 = vld [vmem:[%s224 + $0x50] sm:$0xff]
        %v533 = vld [vmem:[%s224 + $0x58] sm:$0xff]
        %v534 = vld [vmem:[%s224 + $0x60] sm:$0xff]
        %v535 = vld [vmem:[%s224 + $0x68] sm:$0xff]
        %v536 = vld [vmem:[%s224 + $0x70] sm:$0xff]
        %v537 = vld [vmem:[%s224 + $0x78] sm:$0xff]
        %v538 = vstv %s235
        %v539 = vmul.f32 %v522, %v538
        %v540 = vmul.f32 %v523, %v538
        %v541 = vmul.f32 %v524, %v538
        %v542 = vmul.f32 %v525, %v538
        %v543 = vmul.f32 %v526, %v538
        %v544 = vmul.f32 %v527, %v538
        %v545 = vmul.f32 %v528, %v538
        %v546 = vmul.f32 %v529, %v538
        %v547 = vmul.f32 %v530, %v538
        %v548 = vmul.f32 %v531, %v538
        %v549 = vmul.f32 %v532, %v538
        %v550 = vmul.f32 %v533, %v538
        %v551 = vmul.f32 %v534, %v538
        %v552 = vmul.f32 %v535, %v538
        %v553 = vmul.f32 %v536, %v538
        %v554 = vmul.f32 %v537, %v538
        %v555 = vmax.f32 %v539, -1.0
        %v556 = vmax.f32 %v540, -1.0
        %v557 = vmax.f32 %v541, -1.0
        %v558 = vmax.f32 %v542, -1.0
        %v559 = vmax.f32 %v543, -1.0
        %v560 = vmax.f32 %v544, -1.0
        %v561 = vmax.f32 %v545, -1.0
        %v562 = vmax.f32 %v546, -1.0
        %v563 = vmax.f32 %v547, -1.0
        %v564 = vmax.f32 %v548, -1.0
        %v565 = vmax.f32 %v549, -1.0
        %v566 = vmax.f32 %v550, -1.0
        %v567 = vmax.f32 %v551, -1.0
        %v568 = vmax.f32 %v552, -1.0
        %v569 = vmax.f32 %v553, -1.0
        %v570 = vmax.f32 %v554, -1.0
        %v571 = vmin.f32 %v555, 1.0
        %v572 = vmin.f32 %v556, 1.0
        %v573 = vmin.f32 %v557, 1.0
        %v574 = vmin.f32 %v558, 1.0
        %v575 = vmin.f32 %v559, 1.0
        %v576 = vmin.f32 %v560, 1.0
        %v577 = vmin.f32 %v561, 1.0
        %v578 = vmin.f32 %v562, 1.0
        %v579 = vmin.f32 %v563, 1.0
        %v580 = vmin.f32 %v564, 1.0
        %v581 = vmin.f32 %v565, 1.0
        %v582 = vmin.f32 %v566, 1.0
        %v583 = vmin.f32 %v567, 1.0
        %v584 = vmin.f32 %v568, 1.0
        %v585 = vmin.f32 %v569, 1.0
        %v586 = vmin.f32 %v570, 1.0
        %v587 = vmul.f32 %v571, %v506
        %v588 = vmul.f32 %v572, %v507
        %v589 = vmul.f32 %v573, %v508
        %v590 = vmul.f32 %v574, %v509
        %v591 = vmul.f32 %v575, %v510
        %v592 = vmul.f32 %v576, %v511
        %v593 = vmul.f32 %v577, %v512
        %v594 = vmul.f32 %v578, %v513
        %v595 = vmul.f32 %v579, %v514
        %v596 = vmul.f32 %v580, %v515
        %v597 = vmul.f32 %v581, %v516
        %v598 = vmul.f32 %v582, %v517
        %v599 = vmul.f32 %v583, %v518
        %v600 = vmul.f32 %v584, %v519
        %v601 = vmul.f32 %v585, %v520
        %v602 = vmul.f32 %v586, %v521
        %603 = vst [vmem:[%s211] sm:$0xff] %v587
        %604 = vst [vmem:[%s211 + $0x8] sm:$0xff] %v588
        %605 = vst [vmem:[%s211 + $0x10] sm:$0xff] %v589
        %606 = vst [vmem:[%s211 + $0x18] sm:$0xff] %v590
        %607 = vst [vmem:[%s211 + $0x20] sm:$0xff] %v591
        %608 = vst [vmem:[%s211 + $0x28] sm:$0xff] %v592
        %609 = vst [vmem:[%s211 + $0x30] sm:$0xff] %v593
        %610 = vst [vmem:[%s211 + $0x38] sm:$0xff] %v594
        %611 = vst [vmem:[%s211 + $0x40] sm:$0xff] %v595
        %612 = vst [vmem:[%s211 + $0x48] sm:$0xff] %v596
        %613 = vst [vmem:[%s211 + $0x50] sm:$0xff] %v597
        %614 = vst [vmem:[%s211 + $0x58] sm:$0xff] %v598
        %615 = vst [vmem:[%s211 + $0x60] sm:$0xff] %v599
        %616 = vst [vmem:[%s211 + $0x68] sm:$0xff] %v600
        %617 = vst [vmem:[%s211 + $0x70] sm:$0xff] %v601
        %618 = vst [vmem:[%s211 + $0x78] sm:$0xff] %v602
        %s619 = sand.u32 %s108, 1
        %s620 = sand.u32 %s108, 1
        %s621 = smul.addr %s620, 128
        %s622 = scalar_lea.vmem [#allocation5], %s621
        // Predicated region
        $region37: #{_wav_aug_impl.1} parent=31 // pred_check
          %p623 = pneg %p118
        $region38: #{_wav_aug_impl.1} parent=31 // pred_check_branch
          %625 = sbr.rel (%p623) target = $region40
        $region39: #{_wav_aug_impl.1} parent=31 // pred_region
          %s626 = smul.u32 16, %s21
          %s627 = ssub.s32 17, %s626
          %p628 = scmp.lt.s32.totalorder %s627, 16
          %s629 = scalar_select %p628, %s627, 16
          %s630 = smul.u32 8, %s629
          %p631 = scmp.ne.s32.totalorder 0, %s630
          %s632 = smul.addr %s20, 17
          %s633 = sadd.s32 %s626, %s632
          %s634 = smul.addr %s633, 8
          %s635 = scalar_lea.vmem %s3, %s634
          %s636 = smul.u32 %s629, 8
          // Predicated region
          $region41: #{_wav_aug_impl.1} parent=39 // pred_check
            %p637 = pneg %p631
          $region42: #{_wav_aug_impl.1} parent=39 // pred_check_branch
            %639 = sbr.rel (%p637) target = $region44
          $region43: #{_wav_aug_impl.1} parent=39 // pred_region
            %p640 = scmp.lt.u32.totalorder %s636, 8
            %p641 = pneg %p640
            // Predicated region
            $region45: #{_wav_aug_impl.1} parent=43 // pred_check
              _
            $region46: #{_wav_aug_impl.1} parent=43 // pred_check_branch
              %643 = sbr.rel (%p640) target = $region48
            $region47: #{_wav_aug_impl.1} parent=43 // pred_region
              %s659 = sand.u32 %s636, 7
              %p660 = scmp.eq.s32.totalorder %s659, 0
              // Predicated region
              $region60: #{_wav_aug_impl.1} parent=47 // pred_check
                %p661 = pneg %p660
              $region61: #{_wav_aug_impl.1} parent=47 // pred_check_branch
                %663 = sbr.rel (%p661) target = $region63
              $region62: #{_wav_aug_impl.1} parent=47 // pred_region
                %s664 = sshrl.u32 %s636, 3
                %s665 = sshrl.u32 %s664, 5
                // While loop
                $region64: #{_wav_aug_impl.1} parent=62 // loop_pre_header
                  _
                $region65: #{_wav_aug_impl.1} parent=62 // loop_header
                  %s667 = sphi 0, %s669
                  %p668 = scmp.ge.s32.totalorder %s667, %s665
                  %s672 = sphi 0, %s741
                  %s673 = sphi %s622, %s744
                  %s674 = sphi %s635, %s745
                $region66: #{_wav_aug_impl.1} parent=62 // loop_header_branch
                  %671 = sbr.rel (%p668) target = $region70
                $region67: #{_wav_aug_impl.1} parent=62 // loop_body
                  %v675 = vld [vmem:[%s673] sm:$0xff]
                  %676 = vst [vmem:[%s674] sm:$0xff] %v675
                  %v677 = vld [vmem:[%s673 + $0x8] sm:$0xff]
                  %678 = vst [vmem:[%s674 + $0x8] sm:$0xff] %v677
                  %v679 = vld [vmem:[%s673 + $0x10] sm:$0xff]
                  %680 = vst [vmem:[%s674 + $0x10] sm:$0xff] %v679
                  %v681 = vld [vmem:[%s673 + $0x18] sm:$0xff]
                  %682 = vst [vmem:[%s674 + $0x18] sm:$0xff] %v681
                  %v683 = vld [vmem:[%s673 + $0x20] sm:$0xff]
                  %684 = vst [vmem:[%s674 + $0x20] sm:$0xff] %v683
                  %v685 = vld [vmem:[%s673 + $0x28] sm:$0xff]
                  %686 = vst [vmem:[%s674 + $0x28] sm:$0xff] %v685
                  %v687 = vld [vmem:[%s673 + $0x30] sm:$0xff]
                  %688 = vst [vmem:[%s674 + $0x30] sm:$0xff] %v687
                  %v689 = vld [vmem:[%s673 + $0x38] sm:$0xff]
                  %690 = vst [vmem:[%s674 + $0x38] sm:$0xff] %v689
                  %v691 = vld [vmem:[%s673 + $0x40] sm:$0xff]
                  %692 = vst [vmem:[%s674 + $0x40] sm:$0xff] %v691
                  %v693 = vld [vmem:[%s673 + $0x48] sm:$0xff]
                  %694 = vst [vmem:[%s674 + $0x48] sm:$0xff] %v693
                  %v695 = vld [vmem:[%s673 + $0x50] sm:$0xff]
                  %696 = vst [vmem:[%s674 + $0x50] sm:$0xff] %v695
                  %v697 = vld [vmem:[%s673 + $0x58] sm:$0xff]
                  %698 = vst [vmem:[%s674 + $0x58] sm:$0xff] %v697
                  %v699 = vld [vmem:[%s673 + $0x60] sm:$0xff]
                  %700 = vst [vmem:[%s674 + $0x60] sm:$0xff] %v699
                  %v701 = vld [vmem:[%s673 + $0x68] sm:$0xff]
                  %702 = vst [vmem:[%s674 + $0x68] sm:$0xff] %v701
                  %v703 = vld [vmem:[%s673 + $0x70] sm:$0xff]
                  %704 = vst [vmem:[%s674 + $0x70] sm:$0xff] %v703
                  %v705 = vld [vmem:[%s673 + $0x78] sm:$0xff]
                  %706 = vst [vmem:[%s674 + $0x78] sm:$0xff] %v705
                  %v707 = vld [vmem:[%s673 + $0x80] sm:$0xff]
                  %708 = vst [vmem:[%s674 + $0x80] sm:$0xff] %v707
                  %v709 = vld [vmem:[%s673 + $0x88] sm:$0xff]
                  %710 = vst [vmem:[%s674 + $0x88] sm:$0xff] %v709
                  %v711 = vld [vmem:[%s673 + $0x90] sm:$0xff]
                  %712 = vst [vmem:[%s674 + $0x90] sm:$0xff] %v711
                  %v713 = vld [vmem:[%s673 + $0x98] sm:$0xff]
                  %714 = vst [vmem:[%s674 + $0x98] sm:$0xff] %v713
                  %v715 = vld [vmem:[%s673 + $0xa0] sm:$0xff]
                  %716 = vst [vmem:[%s674 + $0xa0] sm:$0xff] %v715
                  %v717 = vld [vmem:[%s673 + $0xa8] sm:$0xff]
                  %718 = vst [vmem:[%s674 + $0xa8] sm:$0xff] %v717
                  %v719 = vld [vmem:[%s673 + $0xb0] sm:$0xff]
                  %720 = vst [vmem:[%s674 + $0xb0] sm:$0xff] %v719
                  %v721 = vld [vmem:[%s673 + $0xb8] sm:$0xff]
                  %722 = vst [vmem:[%s674 + $0xb8] sm:$0xff] %v721
                  %v723 = vld [vmem:[%s673 + $0xc0] sm:$0xff]
                  %724 = vst [vmem:[%s674 + $0xc0] sm:$0xff] %v723
                  %v725 = vld [vmem:[%s673 + $0xc8] sm:$0xff]
                  %726 = vst [vmem:[%s674 + $0xc8] sm:$0xff] %v725
                  %v727 = vld [vmem:[%s673 + $0xd0] sm:$0xff]
                  %728 = vst [vmem:[%s674 + $0xd0] sm:$0xff] %v727
                  %v729 = vld [vmem:[%s673 + $0xd8] sm:$0xff]
                  %730 = vst [vmem:[%s674 + $0xd8] sm:$0xff] %v729
                  %v731 = vld [vmem:[%s673 + $0xe0] sm:$0xff]
                  %732 = vst [vmem:[%s674 + $0xe0] sm:$0xff] %v731
                  %v733 = vld [vmem:[%s673 + $0xe8] sm:$0xff]
                  %734 = vst [vmem:[%s674 + $0xe8] sm:$0xff] %v733
                  %v735 = vld [vmem:[%s673 + $0xf0] sm:$0xff]
                  %736 = vst [vmem:[%s674 + $0xf0] sm:$0xff] %v735
                  %v737 = vld [vmem:[%s673 + $0xf8] sm:$0xff]
                  %738 = vst [vmem:[%s674 + $0xf8] sm:$0xff] %v737
                  %s739 = sadd.s32 1, %s672
                  %p740 = scmp.ge.s32.totalorder %s739, %s665
                  %s741 = scalar_select %p740, 0, %s739
                  %s742 = smul.u32 %s741, 256
                  %s743 = smul.u32 %s741, 256
                  %s744 = scalar_lea.vmem %s622, %s742 [#allocation5]
                  %s745 = scalar_lea.vmem %s635, %s743
                $region68: #{_wav_aug_impl.1} parent=62 // loop_footer
                  %s669 = sadd.s32 %s667, 1
                $region69: #{_wav_aug_impl.1} parent=62 // loop_footer_branch
                  %666 = sbr.rel target = $region65
                $region70: #{_wav_aug_impl.1} parent=62 // loop_exit
                  _
                %s746 = sshrl.u32 %s664, 5
                %s747 = sand.u32 %s664, 31
                %s748 = smul.u32 %s746, 32
                %s749 = smul.u32 8, %s748
                %s750 = scalar_lea.vmem %s622, %s749 [#allocation5]
                %s751 = smul.u32 8, %s748
                %s752 = scalar_lea.vmem %s635, %s751
                // While loop
                $region71: #{_wav_aug_impl.1} parent=62 // loop_pre_header
                  _
                $region72: #{_wav_aug_impl.1} parent=62 // loop_header
                  %s754 = sphi 0, %s756
                  %p755 = scmp.ge.s32.totalorder %s754, %s747
                  %s759 = sphi 0, %s766
                  %s760 = sphi %s750, %s769
                  %s761 = sphi %s752, %s770
                $region73: #{_wav_aug_impl.1} parent=62 // loop_header_branch
                  %758 = sbr.rel (%p755) target = $region77
                $region74: #{_wav_aug_impl.1} parent=62 // loop_body
                  %v762 = vld [vmem:[%s760] sm:$0xff]
                  %763 = vst [vmem:[%s761] sm:$0xff] %v762
                  %s764 = sadd.s32 1, %s759
                  %p765 = scmp.ge.s32.totalorder %s764, %s747
                  %s766 = scalar_select %p765, 0, %s764
                  %s767 = smul.u32 %s766, 8
                  %s768 = smul.u32 %s766, 8
                  %s769 = scalar_lea.vmem %s750, %s767 [#allocation5]
                  %s770 = scalar_lea.vmem %s752, %s768
                $region75: #{_wav_aug_impl.1} parent=62 // loop_footer
                  %s756 = sadd.s32 %s754, 1
                $region76: #{_wav_aug_impl.1} parent=62 // loop_footer_branch
                  %753 = sbr.rel target = $region72
                $region77: #{_wav_aug_impl.1} parent=62 // loop_exit
                  _
              $region63: #{_wav_aug_impl.1} parent=47 // pred_fallthru
                _
              %p771 = pneg %p660
              // Predicated region
              $region78: #{_wav_aug_impl.1} parent=47 // pred_check
                _
              $region79: #{_wav_aug_impl.1} parent=47 // pred_check_branch
                %773 = sbr.rel (%p660) target = $region81
              $region80: #{_wav_aug_impl.1} parent=47 // pred_region
                %s774 = sand.u32 %s636, 7
                %s775 = ssub.s32 %s636, %s774
                %s776 = scalar_lea.vmem %s622, %s775 [#allocation5]
                %s777 = ssub.s32 %s636, %s774
                %s778 = scalar_lea.vmem %s635, %s777
                %s779 = sshrl.u32 %s636, 3
                %s780 = sshrl.u32 %s779, 5
                // While loop
                $region82: #{_wav_aug_impl.1} parent=80 // loop_pre_header
                  _
                $region83: #{_wav_aug_impl.1} parent=80 // loop_header
                  %s782 = sphi 0, %s784
                  %p783 = scmp.ge.s32.totalorder %s782, %s780
                  %s787 = sphi 0, %s856
                  %s788 = sphi %s622, %s859
                  %s789 = sphi %s635, %s860
                $region84: #{_wav_aug_impl.1} parent=80 // loop_header_branch
                  %786 = sbr.rel (%p783) target = $region88
                $region85: #{_wav_aug_impl.1} parent=80 // loop_body
                  %v790 = vld [vmem:[%s788] sm:$0xff]
                  %791 = vst [vmem:[%s789] sm:$0xff] %v790
                  %v792 = vld [vmem:[%s788 + $0x8] sm:$0xff]
                  %793 = vst [vmem:[%s789 + $0x8] sm:$0xff] %v792
                  %v794 = vld [vmem:[%s788 + $0x10] sm:$0xff]
                  %795 = vst [vmem:[%s789 + $0x10] sm:$0xff] %v794
                  %v796 = vld [vmem:[%s788 + $0x18] sm:$0xff]
                  %797 = vst [vmem:[%s789 + $0x18] sm:$0xff] %v796
                  %v798 = vld [vmem:[%s788 + $0x20] sm:$0xff]
                  %799 = vst [vmem:[%s789 + $0x20] sm:$0xff] %v798
                  %v800 = vld [vmem:[%s788 + $0x28] sm:$0xff]
                  %801 = vst [vmem:[%s789 + $0x28] sm:$0xff] %v800
                  %v802 = vld [vmem:[%s788 + $0x30] sm:$0xff]
                  %803 = vst [vmem:[%s789 + $0x30] sm:$0xff] %v802
                  %v804 = vld [vmem:[%s788 + $0x38] sm:$0xff]
                  %805 = vst [vmem:[%s789 + $0x38] sm:$0xff] %v804
                  %v806 = vld [vmem:[%s788 + $0x40] sm:$0xff]
                  %807 = vst [vmem:[%s789 + $0x40] sm:$0xff] %v806
                  %v808 = vld [vmem:[%s788 + $0x48] sm:$0xff]
                  %809 = vst [vmem:[%s789 + $0x48] sm:$0xff] %v808
                  %v810 = vld [vmem:[%s788 + $0x50] sm:$0xff]
                  %811 = vst [vmem:[%s789 + $0x50] sm:$0xff] %v810
                  %v812 = vld [vmem:[%s788 + $0x58] sm:$0xff]
                  %813 = vst [vmem:[%s789 + $0x58] sm:$0xff] %v812
                  %v814 = vld [vmem:[%s788 + $0x60] sm:$0xff]
                  %815 = vst [vmem:[%s789 + $0x60] sm:$0xff] %v814
                  %v816 = vld [vmem:[%s788 + $0x68] sm:$0xff]
                  %817 = vst [vmem:[%s789 + $0x68] sm:$0xff] %v816
                  %v818 = vld [vmem:[%s788 + $0x70] sm:$0xff]
                  %819 = vst [vmem:[%s789 + $0x70] sm:$0xff] %v818
                  %v820 = vld [vmem:[%s788 + $0x78] sm:$0xff]
                  %821 = vst [vmem:[%s789 + $0x78] sm:$0xff] %v820
                  %v822 = vld [vmem:[%s788 + $0x80] sm:$0xff]
                  %823 = vst [vmem:[%s789 + $0x80] sm:$0xff] %v822
                  %v824 = vld [vmem:[%s788 + $0x88] sm:$0xff]
                  %825 = vst [vmem:[%s789 + $0x88] sm:$0xff] %v824
                  %v826 = vld [vmem:[%s788 + $0x90] sm:$0xff]
                  %827 = vst [vmem:[%s789 + $0x90] sm:$0xff] %v826
                  %v828 = vld [vmem:[%s788 + $0x98] sm:$0xff]
                  %829 = vst [vmem:[%s789 + $0x98] sm:$0xff] %v828
                  %v830 = vld [vmem:[%s788 + $0xa0] sm:$0xff]
                  %831 = vst [vmem:[%s789 + $0xa0] sm:$0xff] %v830
                  %v832 = vld [vmem:[%s788 + $0xa8] sm:$0xff]
                  %833 = vst [vmem:[%s789 + $0xa8] sm:$0xff] %v832
                  %v834 = vld [vmem:[%s788 + $0xb0] sm:$0xff]
                  %835 = vst [vmem:[%s789 + $0xb0] sm:$0xff] %v834
                  %v836 = vld [vmem:[%s788 + $0xb8] sm:$0xff]
                  %837 = vst [vmem:[%s789 + $0xb8] sm:$0xff] %v836
                  %v838 = vld [vmem:[%s788 + $0xc0] sm:$0xff]
                  %839 = vst [vmem:[%s789 + $0xc0] sm:$0xff] %v838
                  %v840 = vld [vmem:[%s788 + $0xc8] sm:$0xff]
                  %841 = vst [vmem:[%s789 + $0xc8] sm:$0xff] %v840
                  %v842 = vld [vmem:[%s788 + $0xd0] sm:$0xff]
                  %843 = vst [vmem:[%s789 + $0xd0] sm:$0xff] %v842
                  %v844 = vld [vmem:[%s788 + $0xd8] sm:$0xff]
                  %845 = vst [vmem:[%s789 + $0xd8] sm:$0xff] %v844
                  %v846 = vld [vmem:[%s788 + $0xe0] sm:$0xff]
                  %847 = vst [vmem:[%s789 + $0xe0] sm:$0xff] %v846
                  %v848 = vld [vmem:[%s788 + $0xe8] sm:$0xff]
                  %849 = vst [vmem:[%s789 + $0xe8] sm:$0xff] %v848
                  %v850 = vld [vmem:[%s788 + $0xf0] sm:$0xff]
                  %851 = vst [vmem:[%s789 + $0xf0] sm:$0xff] %v850
                  %v852 = vld [vmem:[%s788 + $0xf8] sm:$0xff]
                  %853 = vst [vmem:[%s789 + $0xf8] sm:$0xff] %v852
                  %s854 = sadd.s32 1, %s787
                  %p855 = scmp.ge.s32.totalorder %s854, %s780
                  %s856 = scalar_select %p855, 0, %s854
                  %s857 = smul.u32 %s856, 256
                  %s858 = smul.u32 %s856, 256
                  %s859 = scalar_lea.vmem %s622, %s857 [#allocation5]
                  %s860 = scalar_lea.vmem %s635, %s858
                $region86: #{_wav_aug_impl.1} parent=80 // loop_footer
                  %s784 = sadd.s32 %s782, 1
                $region87: #{_wav_aug_impl.1} parent=80 // loop_footer_branch
                  %781 = sbr.rel target = $region83
                $region88: #{_wav_aug_impl.1} parent=80 // loop_exit
                  _
                %s861 = sshrl.u32 %s779, 5
                %s862 = sand.u32 %s779, 31
                %s863 = smul.u32 %s861, 32
                %s864 = smul.u32 8, %s863
                %s865 = scalar_lea.vmem %s622, %s864 [#allocation5]
                %s866 = smul.u32 8, %s863
                %s867 = scalar_lea.vmem %s635, %s866
                // While loop
                $region89: #{_wav_aug_impl.1} parent=80 // loop_pre_header
                  _
                $region90: #{_wav_aug_impl.1} parent=80 // loop_header
                  %s869 = sphi 0, %s871
                  %p870 = scmp.ge.s32.totalorder %s869, %s862
                  %s874 = sphi 0, %s881
                  %s875 = sphi %s865, %s884
                  %s876 = sphi %s867, %s885
                $region91: #{_wav_aug_impl.1} parent=80 // loop_header_branch
                  %873 = sbr.rel (%p870) target = $region95
                $region92: #{_wav_aug_impl.1} parent=80 // loop_body
                  %v877 = vld [vmem:[%s875] sm:$0xff]
                  %878 = vst [vmem:[%s876] sm:$0xff] %v877
                  %s879 = sadd.s32 1, %s874
                  %p880 = scmp.ge.s32.totalorder %s879, %s862
                  %s881 = scalar_select %p880, 0, %s879
                  %s882 = smul.u32 %s881, 8
                  %s883 = smul.u32 %s881, 8
                  %s884 = scalar_lea.vmem %s865, %s882 [#allocation5]
                  %s885 = scalar_lea.vmem %s867, %s883
                $region93: #{_wav_aug_impl.1} parent=80 // loop_footer
                  %s871 = sadd.s32 %s869, 1
                $region94: #{_wav_aug_impl.1} parent=80 // loop_footer_branch
                  %868 = sbr.rel target = $region90
                $region95: #{_wav_aug_impl.1} parent=80 // loop_exit
                  _
                %s886 = sshll.u32 1, %s774
                %s887 = ssub.s32 %s886, 1
                loop: start=0, step=1, limit=1
                $region96: #{_wav_aug_impl.1} parent=80 // loop_pre_header
                  _
                $region97: #{_wav_aug_impl.1} parent=80 // loop_header
                  %s889 = sphi 0, %s893
                  %p890 = scmp.ge.s32.totalorder %s889, 1
                  %s894 = sphi %s776, %s776
                  %s895 = sphi %s778, %s778
                $region98: #{_wav_aug_impl.1} parent=80 // loop_header_branch
                  %892 = sbr.rel (%p890) target = $region102
                $region99: #{_wav_aug_impl.1} parent=80 // loop_body
                  %v896 = vld [vmem:[%s894] sm:%s887]
                  %897 = vst [vmem:[%s895] sm:%s887] %v896
                $region100: #{_wav_aug_impl.1} parent=80 // loop_footer
                  %s893 = sadd.s32 1, %s889
                $region101: #{_wav_aug_impl.1} parent=80 // loop_footer_branch
                  %888 = sbr.rel target = $region97
                $region102: #{_wav_aug_impl.1} parent=80 // loop_exit
                  _
              $region81: #{_wav_aug_impl.1} parent=47 // pred_fallthru
                _
            $region48: #{_wav_aug_impl.1} parent=43 // pred_fallthru
              _
            // Predicated region
            $region49: #{_wav_aug_impl.1} parent=43 // pred_check
              %p644 = pneg %p640
            $region50: #{_wav_aug_impl.1} parent=43 // pred_check_branch
              %646 = sbr.rel (%p644) target = $region52
            $region51: #{_wav_aug_impl.1} parent=43 // pred_region
              %s647 = sshll.u32 1, %s636
              %s648 = ssub.s32 %s647, 1
              loop: start=0, step=1, limit=1
              $region53: #{_wav_aug_impl.1} parent=51 // loop_pre_header
                _
              $region54: #{_wav_aug_impl.1} parent=51 // loop_header
                %s650 = sphi 0, %s654
                %p651 = scmp.ge.s32.totalorder %s650, 1
                %s655 = sphi %s622, %s622
                %s656 = sphi %s635, %s635
              $region55: #{_wav_aug_impl.1} parent=51 // loop_header_branch
                %653 = sbr.rel (%p651) target = $region59
              $region56: #{_wav_aug_impl.1} parent=51 // loop_body
                %v657 = vld [vmem:[%s655] sm:%s648]
                %658 = vst [vmem:[%s656] sm:%s648] %v657
              $region57: #{_wav_aug_impl.1} parent=51 // loop_footer
                %s654 = sadd.s32 1, %s650
              $region58: #{_wav_aug_impl.1} parent=51 // loop_footer_branch
                %649 = sbr.rel target = $region54
              $region59: #{_wav_aug_impl.1} parent=51 // loop_exit
                _
            $region52: #{_wav_aug_impl.1} parent=43 // pred_fallthru
              _
          $region44: #{_wav_aug_impl.1} parent=39 // pred_fallthru
            _
          %898 = vnop
        $region40: #{_wav_aug_impl.1} parent=31 // pred_fallthru
          _
      $region32: #{_wav_aug_impl.1} parent=5 // pred_fallthru
        _
      %p899 = scmp.le.s32.totalorder 2, %s11
      // Predicated region
      $region103: #{_wav_aug_impl.1} parent=5 // pred_check
        %p900 = pneg %p899
      $region104: #{_wav_aug_impl.1} parent=5 // pred_check_branch
        %902 = sbr.rel (%p900) target = $region106
      $region105: #{_wav_aug_impl.1} parent=5 // pred_region
        %s903 = ssub.s32 %s11, 2
        // Predicated region
        $region107: #{_wav_aug_impl.1} parent=105 // pred_check
          %p904 = pneg %p124
        $region108: #{_wav_aug_impl.1} parent=105 // pred_check_branch
          %906 = sbr.rel (%p904) target = $region110
        $region109: #{_wav_aug_impl.1} parent=105 // pred_region
          %s907 = sand.u32 %s109, 1
          %s908 = sand.u32 %s109, 1
          %s909 = smul.addr %s908, 128
          %s910 = scalar_lea.vmem [#allocation5], %s909
        $region110: #{_wav_aug_impl.1} parent=105 // pred_fallthru
          _
      $region106: #{_wav_aug_impl.1} parent=5 // pred_fallthru
        _
    $region6: #{_wav_aug_impl.1} parent=1 // loop_footer
      %s15 = sadd.s32 1, %s11
    $region7: #{_wav_aug_impl.1} parent=1 // loop_footer_branch
      %10 = sbr.rel target = $region3
    $region8: #{_wav_aug_impl.1} parent=1 // loop_exit
      _
    %911 = vsyncpa [#allocation4], 1
    %s912 = scalar_lea.sflag [#allocation4], 1
    %913 = vsyncpa %s912, 1

</llo_original>
